<compile_context>
chip_gen: v5e
topology: v5e:2x2
jax: 0.10.0
libtpu: 0.0.40
codegen_flags: <defaults>
</compile_context>

<pallas_src>
import functools
import math

import jax
import jax.numpy as jnp
from jax import lax
from jax.experimental import pallas as pl
from jax.experimental.pallas import tpu as pltpu


def _vmem():
    # whole-array resident in VMEM (everything here is tiny; no tiling needed)
    return pl.BlockSpec(memory_space=pltpu.MemorySpace.VMEM)


def _round_up(v, m):
    return ((v + m - 1) // m) * m


# ---------------------------------------------------------------------------
# Kernel 1: gram + MLPEmbed (all layers) + energies + softmax, fully fused
# ---------------------------------------------------------------------------

def attn_fused_kernel(*refs, s_len, t_len, inv_soft):
    n_layers = s_len + t_len
    x_refs = refs[:n_layers]
    w1_ref, b1_ref, w2_ref, b2_ref, attn_ref = refs[n_layers:]

    embs = []
    for l in range(n_layers):
        x = x_refs[l][...]                                          # (B, K_l)
        # gram x @ x.T: contract the K axis of both operands (no transpose op)
        sim = lax.dot_general(x, x, (((1,), (1,)), ((), ())),
                              preferred_element_type=jnp.float32)   # (B, B)
        h = jnp.dot(sim, w1_ref[l],
                    preferred_element_type=jnp.float32) + b1_ref[l]
        h = jnp.maximum(h, 0.0)
        y = jnp.dot(h, w2_ref[l],
                    preferred_element_type=jnp.float32) + b2_ref[l]
        # row-wise L2 normalize (PyTorch Normalize(power=2): no eps, matches ref)
        embs.append(y * lax.rsqrt(jnp.sum(y * y, axis=-1, keepdims=True)))

    # energies + softmax on the VPU (S, T, D are tiny; MXU fixed cost dominates)
    rows = []
    for s in range(s_len):
        cols = [jnp.sum(embs[s] * embs[s_len + t], axis=-1, keepdims=True)
                for t in range(t_len)]
        e = jnp.concatenate(cols, axis=-1) * inv_soft               # (B, T)
        m = jnp.max(e, axis=-1, keepdims=True)
        p = jnp.exp(e - m)
        rows.append(p / jnp.sum(p, axis=-1, keepdims=True))
    attn_ref[...] = jnp.concatenate(rows, axis=-1)                  # (B, S*T)


def pallas_attention(packed, flat_feats, *, soft, bsz, s_len, t_len):
    kern = functools.partial(attn_fused_kernel, s_len=s_len, t_len=t_len,
                             inv_soft=1.0 / float(soft))
    n_in = len(flat_feats) + 4
    attn = pl.pallas_call(
        kern,
        out_shape=jax.ShapeDtypeStruct((bsz, s_len * t_len), jnp.float32),
        in_specs=[_vmem() for _ in range(n_in)],
        out_specs=_vmem(),
    )(*flat_feats, packed["w1"], packed["b1"], packed["w2"], packed["b2"])
    # free reshape (no transpose): (B, S*T) -> (B, S, T)
    return attn.reshape(bsz, s_len, t_len)


# ---------------------------------------------------------------------------
# Kernel 2: all Proj regressors in one gridded call (channel-major layout)
# ---------------------------------------------------------------------------

def proj_batched_kernel(meta_ref, x_ref, w1_ref, g1_ref, be1_ref,
                        w2_ref, g2_ref, be2_ref, w3_ref, o_ref,
                        *, n, hp, wp, eps):
    r = pl.program_id(0)
    h = meta_ref[r, 0]                     # valid height of this regressor's input
    w = meta_ref[r, 1]                     # valid width
    nrows = n * hp * wp
    inv_cnt = 1.0 / (n * h * w).astype(jnp.float32)

    # pixel coordinates of every row of the padded (n, hp, wp) layout (rows=lanes)
    ridx = lax.broadcasted_iota(jnp.int32, (1, nrows), 1)
    y_idx = (ridx // wp) % hp
    x_idx = ridx % wp
    dest_valid = ((y_idx < h) & (x_idx < w)).astype(jnp.float32)    # (1, nrows)

    def bn_relu(z, gamma, beta):
        # training-mode BatchNorm over the valid rows only (masked two-pass,
        # biased variance) + ReLU.  Padded rows/channels stay at relu(beta)=0.
        zm = z * dest_valid
        mean = jnp.sum(zm, axis=1, keepdims=True) * inv_cnt
        cen = (zm - mean) * dest_valid
        var = jnp.sum(cen * cen, axis=1, keepdims=True) * inv_cnt
        return jnp.maximum(cen * lax.rsqrt(var + eps) * gamma + beta, 0.0)

    # ---- stage 1: 1x1 conv (channel-major matmul) + BN + ReLU ----
    y1 = jnp.dot(w1_ref[...], x_ref[...], preferred_element_type=jnp.float32)
    y1 = bn_relu(y1, g1_ref[...], be1_ref[...])                     # (Cm, nrows)

    # ---- stage 2: 3x3 conv (pad=1) as 9 tap matmuls over rolled, masked views.
    #      Rolls run on the XLU; wrapped rows are always covered by the boundary
    #      mask for the 8 non-center taps under this NHW row ordering.  The
    #      center tap needs no roll and no mask. ----
    acc = jnp.dot(w2_ref[4], y1, preferred_element_type=jnp.float32)
    for kh in range(3):
        for kw in range(3):
            dh, dw = kh - 1, kw - 1
            if dh == 0 and dw == 0:
                continue
            src_ok = ((y_idx + dh >= 0) & (y_idx + dh < h) &
                      (x_idx + dw >= 0) & (x_idx + dw < w)).astype(jnp.float32)
            shifted = pltpu.roll(y1, (-(dh * wp + dw)) % nrows, axis=1) * src_ok
            acc = acc + jnp.dot(w2_ref[kh * 3 + kw], shifted,
                                preferred_element_type=jnp.float32)
    y2 = bn_relu(acc, g2_ref[...], be2_ref[...])

    # ---- stage 3: final 1x1 conv; (Cout, nrows) output is lane-dense ----
    o_ref[...] = jnp.dot(w3_ref[...], y2, preferred_element_type=jnp.float32)


def pallas_proj_batched(x_stacked, meta, packed, *, n, hp, wp):
    num_reg, cin_pad, nrows = x_stacked.shape
    cm_pad = packed["w1"].shape[1]
    cout_pad = packed["w3"].shape[1]
    kern = functools.partial(proj_batched_kernel, n=n, hp=hp, wp=wp, eps=1e-5)

    def im3(r, meta_ref):
        return (r, 0, 0)

    def im4(r, meta_ref):
        return (r, 0, 0, 0)

    grid_spec = pltpu.PrefetchScalarGridSpec(
        num_scalar_prefetch=1,
        grid=(num_reg,),
        in_specs=[
            pl.BlockSpec((None, cin_pad, nrows), im3),            # x (channel-major)
            pl.BlockSpec((None, cm_pad, cin_pad), im3),           # w1
            pl.BlockSpec((None, cm_pad, 1), im3),                 # gamma1
            pl.BlockSpec((None, cm_pad, 1), im3),                 # beta1
            pl.BlockSpec((None, 9, cm_pad, cm_pad), im4),         # w2 (per-tap)
            pl.BlockSpec((None, cm_pad, 1), im3),                 # gamma2
            pl.BlockSpec((None, cm_pad, 1), im3),                 # beta2
            pl.BlockSpec((None, cout_pad, cm_pad), im3),          # w3
        ],
        out_specs=pl.BlockSpec((None, cout_pad, nrows), im3),
    )
    return pl.pallas_call(
        kern,
        grid_spec=grid_spec,
        out_shape=jax.ShapeDtypeStruct((num_reg, cout_pad, nrows), jnp.float32),
        compiler_params=pltpu.CompilerParams(
            dimension_semantics=("parallel",)),
    )(meta, x_stacked, packed["w1"], packed["g1"], packed["be1"],
      packed["w2"], packed["g2"], packed["be2"], packed["w3"])


# ---------------------------------------------------------------------------
# Module-level forward (data-movement glue in XLA, compute in Pallas)
# ---------------------------------------------------------------------------

def adaptive_avg_pool_nchw(x, out_hw):
    # matches F.adaptive_avg_pool2d when the input size is a multiple of output
    n, c, h, w = x.shape
    assert h % out_hw == 0 and w % out_hw == 0
    fh, fw = h // out_hw, w // out_hw
    return x.reshape(n, c, out_hw, fh, out_hw, fw).mean(axis=(3, 5))


def selfa_forward(params, feat_s, feat_t, *, soft, feat_dim):
    s_len, t_len = len(feat_s), len(feat_t)
    bsz = feat_dim                              # SelfA uses feat_dim as batch size

    # ---- attention path: one fused pallas_call, un-padded per-layer inputs ----
    flats = [f.reshape(bsz, -1) for f in feat_s] + \
            [f.reshape(bsz, -1) for f in feat_t]
    attention = pallas_attention(params["attn_packed"], flats, soft=soft,
                                 bsz=bsz, s_len=s_len, t_len=t_len)

    # ---- value path: tiny XLA pooling glue + one batched Proj call ----
    sources, value_tea, out_dims = [], [], []
    for i in range(s_len):
        value_tea.append([])
        for j in range(t_len):
            s_h, t_h = feat_s[i].shape[2], feat_t[j].shape[2]
            if s_h > t_h:
                src, tgt = adaptive_avg_pool_nchw(feat_s[i], t_h), feat_t[j]
            else:
                src, tgt = feat_s[i], adaptive_avg_pool_nchw(feat_t[j], s_h)
            sources.append(src)
            value_tea[i].append(tgt)
            out_dims.append((params["regressor"][i][j]["w3"].shape[0],
                             src.shape[2], src.shape[3]))

    packed = params["proj_packed"]
    cin_pad = packed["w1"].shape[2]
    cout_pad = packed["w3"].shape[1]
    hp = max(s.shape[2] for s in sources)
    wp = max(s.shape[3] for s in sources)

    xs, meta = [], []
    for src in sources:
        _, c, h, w = src.shape
        xp = jnp.pad(src, ((0, 0), (0, cin_pad - c), (0, hp - h), (0, wp - w)))
        xs.append(jnp.transpose(xp, (1, 0, 2, 3)).reshape(cin_pad, bsz * hp * wp))
        meta.append((h, w))
    x_stacked = jnp.stack(xs, axis=0)                        # (R, Cin_pad, nrows)
    meta = jnp.asarray(meta, dtype=jnp.int32)                # (R, 2) -> SMEM

    out = pallas_proj_batched(x_stacked, meta, packed, n=bsz, hp=hp, wp=wp)

    proj_value_stu, r = [], 0
    for i in range(s_len):
        proj_value_stu.append([])
        for j in range(t_len):
            cout, h, w = out_dims[r]
            y = out[r].reshape(cout_pad, bsz, hp, wp)[:cout, :, :h, :w]
            proj_value_stu[i].append(jnp.transpose(y, (1, 0, 2, 3)))   # NCHW
            r += 1
    return proj_value_stu, value_tea, attention


# ---------------------------------------------------------------------------
# Deterministic parameter initialization + one-time packing for the kernels
# ---------------------------------------------------------------------------

def _uniform(key, shape, fan_in):
    bound = 1.0 / math.sqrt(fan_in)
    return jax.random.uniform(key, shape, minval=-bound, maxval=bound,
                              dtype=jnp.float32)


def init_mlp_embed(key, dim_in, dim_out):
    k1, k2, k3, k4 = jax.random.split(key, 4)
    return dict(
        w1=_uniform(k1, (dim_in, 2 * dim_out), dim_in),
        b1=_uniform(k2, (1, 2 * dim_out), dim_in),
        w2=_uniform(k3, (2 * dim_out, dim_out), 2 * dim_out),
        b2=_uniform(k4, (1, dim_out), 2 * dim_out),
    )


def init_proj(key, cin, cout):
    # channel-major conv weights: w1 (Cm,Cin), w2 (9,Cm,Cm) per-tap (kh*3+kw),
    # w3 (Cout,Cm).  BN gamma/beta at PyTorch default init (1, 0).
    cm = 2 * cout
    k1, k2, k3 = jax.random.split(key, 3)
    return dict(
        w1=_uniform(k1, (cm, cin), cin),
        w2=_uniform(k2, (9, cm, cm), cm * 9),
        w3=_uniform(k3, (cout, cm), cm),
        g1=jnp.ones((cm,), jnp.float32), be1=jnp.zeros((cm,), jnp.float32),
        g2=jnp.ones((cm,), jnp.float32), be2=jnp.zeros((cm,), jnp.float32),
    )


def pack_attn_params(query, key_mlps):
    mlps = query + key_mlps                       # order matches flats in forward
    return dict(
        w1=jnp.stack([m["w1"] for m in mlps], axis=0),
        b1=jnp.stack([m["b1"] for m in mlps], axis=0),
        w2=jnp.stack([m["w2"] for m in mlps], axis=0),
        b2=jnp.stack([m["b2"] for m in mlps], axis=0),
    )


def pack_proj_params(regressor, s_n, t_n):
    # zero-pad all regressors to common channel sizes and stack on a leading
    # axis; zero weight padding keeps the padded channels exactly zero.
    cin_pad = _round_up(max(s_n), 8)
    cm_pad = _round_up(2 * max(t_n), 8)
    cout_pad = _round_up(max(t_n), 8)
    w1s, w2s, w3s, g1s, be1s, g2s, be2s = [], [], [], [], [], [], []
    for i in range(len(s_n)):
        for j in range(len(t_n)):
            p = regressor[i][j]
            cin, cout = s_n[i], t_n[j]
            cm = 2 * cout
            w1s.append(jnp.pad(p["w1"], ((0, cm_pad - cm), (0, cin_pad - cin))))
            w2s.append(jnp.pad(p["w2"], ((0, 0), (0, cm_pad - cm),
                                         (0, cm_pad - cm))))
            w3s.append(jnp.pad(p["w3"], ((0, cout_pad - cout), (0, cm_pad - cm))))
            g1s.append(jnp.pad(p["g1"], (0, cm_pad - cm)).reshape(cm_pad, 1))
            be1s.append(jnp.pad(p["be1"], (0, cm_pad - cm)).reshape(cm_pad, 1))
            g2s.append(jnp.pad(p["g2"], (0, cm_pad - cm)).reshape(cm_pad, 1))
            be2s.append(jnp.pad(p["be2"], (0, cm_pad - cm)).reshape(cm_pad, 1))
    return dict(
        w1=jnp.stack(w1s), w2=jnp.stack(w2s), w3=jnp.stack(w3s),
        g1=jnp.stack(g1s), be1=jnp.stack(be1s),
        g2=jnp.stack(g2s), be2=jnp.stack(be2s),
    )


def init_selfa(key, feat_dim, s_n, t_n, factor=4):
    d = feat_dim // factor
    keys = jax.random.split(key, len(s_n) + len(t_n) + len(s_n) * len(t_n))
    it = iter(keys)
    query = [init_mlp_embed(next(it), feat_dim, d) for _ in s_n]
    key_mlps = [init_mlp_embed(next(it), feat_dim, d) for _ in t_n]
    regressor = [[init_proj(next(it), s_n[i], t_n[j]) for j in range(len(t_n))]
                 for i in range(len(s_n))]
    return dict(
        query=query, key=key_mlps, regressor=regressor,
        attn_packed=pack_attn_params(query, key_mlps),
        proj_packed=pack_proj_params(regressor, s_n, t_n),
    )


# ---------------------------------------------------------------------------
# Main
# ---------------------------------------------------------------------------

if __name__ == "__main__":
    feat_dim = 16          # SelfA treats feat_dim as the batch size (bsz)
    factor = 4
    soft = 4.0
    s_n = [6, 10]          # student channel counts
    t_n = [8, 4]           # teacher channel counts
    s_hw = [8, 4]          # student spatial sizes
    t_hw = [4, 8]          # teacher spatial sizes

    root = jax.random.PRNGKey(0)
    k_params, k_s, k_t = jax.random.split(root, 3)
    params = init_selfa(k_params, feat_dim, s_n, t_n, factor)

    ks = jax.random.split(k_s, len(s_n))
    kt = jax.random.split(k_t, len(t_n))
    feat_s = [jax.random.normal(ks[i], (feat_dim, s_n[i], s_hw[i], s_hw[i]),
                                dtype=jnp.float32) for i in range(len(s_n))]
    feat_t = [jax.random.normal(kt[j], (feat_dim, t_n[j], t_hw[j], t_hw[j]),
                                dtype=jnp.float32) for j in range(len(t_n))]

    proj_value_stu, value_tea, attention = selfa_forward(
        params, feat_s, feat_t, soft=soft, feat_dim=feat_dim)

    for leaf in jax.tree_util.tree_leaves((proj_value_stu, value_tea, attention)):
        jax.block_until_ready(leaf)

    print("KERNEL_OK")
</pallas_src>

<mosaic_0001>
module attributes {stable_mosaic.version = 11 : i64} {
  func.func @attn_fused_kernel(%arg0: memref<16x384xf32, #tpu.memory_space<vmem>>, %arg1: memref<16x160xf32, #tpu.memory_space<vmem>>, %arg2: memref<16x128xf32, #tpu.memory_space<vmem>>, %arg3: memref<16x256xf32, #tpu.memory_space<vmem>>, %arg4: memref<4x16x8xf32, #tpu.memory_space<vmem>>, %arg5: memref<4x1x8xf32, #tpu.memory_space<vmem>>, %arg6: memref<4x8x4xf32, #tpu.memory_space<vmem>>, %arg7: memref<4x1x4xf32, #tpu.memory_space<vmem>>, %arg8: memref<16x4xf32, #tpu.memory_space<vmem>>) attributes {dimension_semantics = [], scalar_prefetch = 0 : i64, scratch_operands = 0 : i64, tpu.core_type = #tpu.core_type<tc>} {
    %c0 = arith.constant 0 : index
    %c0_0 = arith.constant 0 : index
    %0 = vector.load %arg0[%c0, %c0_0] : memref<16x384xf32, #tpu.memory_space<vmem>>, vector<16x384xf32>
    %cst = arith.constant dense<0.000000e+00> : vector<16x16xf32>
    %1 = tpu.matmul %0, %0, %cst {dimension_numbers = #tpu.dot_dimension_numbers<[1], [1], [0], [0], [0, 0, 1, 0], [], []>} : vector<16x384xf32>, vector<16x384xf32>, vector<16x16xf32> -> vector<16x16xf32>
    %c0_1 = arith.constant 0 : index
    %c0_2 = arith.constant 0 : index
    %c0_3 = arith.constant 0 : index
    %2 = vector.load %arg4[%c0_1, %c0_2, %c0_3] : memref<4x16x8xf32, #tpu.memory_space<vmem>>, vector<1x16x8xf32>
    %3 = vector.shape_cast %2 : vector<1x16x8xf32> to vector<16x8xf32>
    %cst_4 = arith.constant dense<0.000000e+00> : vector<16x8xf32>
    %4 = tpu.matmul %1, %3, %cst_4 {dimension_numbers = #tpu.dot_dimension_numbers<[1], [0], [0], [1], [0, 0, 1, 1], [], []>} : vector<16x16xf32>, vector<16x8xf32>, vector<16x8xf32> -> vector<16x8xf32>
    %c0_5 = arith.constant 0 : index
    %c0_6 = arith.constant 0 : index
    %c0_7 = arith.constant 0 : index
    %5 = vector.load %arg5[%c0_5, %c0_6, %c0_7] : memref<4x1x8xf32, #tpu.memory_space<vmem>>, vector<1x1x8xf32>
    %6 = vector.shape_cast %5 : vector<1x1x8xf32> to vector<1x8xf32>
    %7 = vector.broadcast %6 : vector<1x8xf32> to vector<16x8xf32>
    %8 = arith.addf %4, %7 : vector<16x8xf32>
    %cst_8 = arith.constant 0.000000e+00 : f32
    %9 = vector.broadcast %cst_8 : f32 to vector<16x8xf32>
    %10 = arith.maximumf %8, %9 : vector<16x8xf32>
    %c0_9 = arith.constant 0 : index
    %c0_10 = arith.constant 0 : index
    %c0_11 = arith.constant 0 : index
    %11 = vector.load %arg6[%c0_9, %c0_10, %c0_11] : memref<4x8x4xf32, #tpu.memory_space<vmem>>, vector<1x8x4xf32>
    %12 = vector.shape_cast %11 : vector<1x8x4xf32> to vector<8x4xf32>
    %cst_12 = arith.constant dense<0.000000e+00> : vector<16x4xf32>
    %13 = tpu.matmul %10, %12, %cst_12 {dimension_numbers = #tpu.dot_dimension_numbers<[1], [0], [0], [1], [0, 0, 1, 1], [], []>} : vector<16x8xf32>, vector<8x4xf32>, vector<16x4xf32> -> vector<16x4xf32>
    %c0_13 = arith.constant 0 : index
    %c0_14 = arith.constant 0 : index
    %c0_15 = arith.constant 0 : index
    %14 = vector.load %arg7[%c0_13, %c0_14, %c0_15] : memref<4x1x4xf32, #tpu.memory_space<vmem>>, vector<1x1x4xf32>
    %15 = vector.shape_cast %14 : vector<1x1x4xf32> to vector<1x4xf32>
    %16 = vector.broadcast %15 : vector<1x4xf32> to vector<16x4xf32>
    %17 = arith.addf %13, %16 : vector<16x4xf32>
    %18 = arith.mulf %17, %17 : vector<16x4xf32>
    %cst_16 = arith.constant dense<0.000000e+00> : vector<16xf32>
    %19 = vector.multi_reduction <add>, %18, %cst_16 [1] : vector<16x4xf32> to vector<16xf32>
    %20 = vector.shape_cast %19 : vector<16xf32> to vector<16x1xf32>
    %21 = math.rsqrt %20 : vector<16x1xf32>
    %22 = vector.broadcast %21 : vector<16x1xf32> to vector<16x4xf32>
    %23 = arith.mulf %17, %22 : vector<16x4xf32>
    %c0_17 = arith.constant 0 : index
    %c0_18 = arith.constant 0 : index
    %24 = vector.load %arg1[%c0_17, %c0_18] : memref<16x160xf32, #tpu.memory_space<vmem>>, vector<16x160xf32>
    %cst_19 = arith.constant dense<0.000000e+00> : vector<16x16xf32>
    %25 = tpu.matmul %24, %24, %cst_19 {dimension_numbers = #tpu.dot_dimension_numbers<[1], [1], [0], [0], [0, 0, 1, 0], [], []>} : vector<16x160xf32>, vector<16x160xf32>, vector<16x16xf32> -> vector<16x16xf32>
    %c1 = arith.constant 1 : index
    %c0_20 = arith.constant 0 : index
    %c0_21 = arith.constant 0 : index
    %26 = vector.load %arg4[%c1, %c0_20, %c0_21] : memref<4x16x8xf32, #tpu.memory_space<vmem>>, vector<1x16x8xf32>
    %27 = vector.shape_cast %26 : vector<1x16x8xf32> to vector<16x8xf32>
    %cst_22 = arith.constant dense<0.000000e+00> : vector<16x8xf32>
    %28 = tpu.matmul %25, %27, %cst_22 {dimension_numbers = #tpu.dot_dimension_numbers<[1], [0], [0], [1], [0, 0, 1, 1], [], []>} : vector<16x16xf32>, vector<16x8xf32>, vector<16x8xf32> -> vector<16x8xf32>
    %c1_23 = arith.constant 1 : index
    %c0_24 = arith.constant 0 : index
    %c0_25 = arith.constant 0 : index
    %29 = vector.load %arg5[%c1_23, %c0_24, %c0_25] : memref<4x1x8xf32, #tpu.memory_space<vmem>>, vector<1x1x8xf32>
    %30 = vector.shape_cast %29 : vector<1x1x8xf32> to vector<1x8xf32>
    %31 = vector.broadcast %30 : vector<1x8xf32> to vector<16x8xf32>
    %32 = arith.addf %28, %31 : vector<16x8xf32>
    %cst_26 = arith.constant 0.000000e+00 : f32
    %33 = vector.broadcast %cst_26 : f32 to vector<16x8xf32>
    %34 = arith.maximumf %32, %33 : vector<16x8xf32>
    %c1_27 = arith.constant 1 : index
    %c0_28 = arith.constant 0 : index
    %c0_29 = arith.constant 0 : index
    %35 = vector.load %arg6[%c1_27, %c0_28, %c0_29] : memref<4x8x4xf32, #tpu.memory_space<vmem>>, vector<1x8x4xf32>
    %36 = vector.shape_cast %35 : vector<1x8x4xf32> to vector<8x4xf32>
    %cst_30 = arith.constant dense<0.000000e+00> : vector<16x4xf32>
    %37 = tpu.matmul %34, %36, %cst_30 {dimension_numbers = #tpu.dot_dimension_numbers<[1], [0], [0], [1], [0, 0, 1, 1], [], []>} : vector<16x8xf32>, vector<8x4xf32>, vector<16x4xf32> -> vector<16x4xf32>
    %c1_31 = arith.constant 1 : index
    %c0_32 = arith.constant 0 : index
    %c0_33 = arith.constant 0 : index
    %38 = vector.load %arg7[%c1_31, %c0_32, %c0_33] : memref<4x1x4xf32, #tpu.memory_space<vmem>>, vector<1x1x4xf32>
    %39 = vector.shape_cast %38 : vector<1x1x4xf32> to vector<1x4xf32>
    %40 = vector.broadcast %39 : vector<1x4xf32> to vector<16x4xf32>
    %41 = arith.addf %37, %40 : vector<16x4xf32>
    %42 = arith.mulf %41, %41 : vector<16x4xf32>
    %cst_34 = arith.constant dense<0.000000e+00> : vector<16xf32>
    %43 = vector.multi_reduction <add>, %42, %cst_34 [1] : vector<16x4xf32> to vector<16xf32>
    %44 = vector.shape_cast %43 : vector<16xf32> to vector<16x1xf32>
    %45 = math.rsqrt %44 : vector<16x1xf32>
    %46 = vector.broadcast %45 : vector<16x1xf32> to vector<16x4xf32>
    %47 = arith.mulf %41, %46 : vector<16x4xf32>
    %c0_35 = arith.constant 0 : index
    %c0_36 = arith.constant 0 : index
    %48 = vector.load %arg2[%c0_35, %c0_36] : memref<16x128xf32, #tpu.memory_space<vmem>>, vector<16x128xf32>
    %cst_37 = arith.constant dense<0.000000e+00> : vector<16x16xf32>
    %49 = tpu.matmul %48, %48, %cst_37 {dimension_numbers = #tpu.dot_dimension_numbers<[1], [1], [0], [0], [0, 0, 1, 0], [], []>} : vector<16x128xf32>, vector<16x128xf32>, vector<16x16xf32> -> vector<16x16xf32>
    %c2 = arith.constant 2 : index
    %c0_38 = arith.constant 0 : index
    %c0_39 = arith.constant 0 : index
    %50 = vector.load %arg4[%c2, %c0_38, %c0_39] : memref<4x16x8xf32, #tpu.memory_space<vmem>>, vector<1x16x8xf32>
    %51 = vector.shape_cast %50 : vector<1x16x8xf32> to vector<16x8xf32>
    %cst_40 = arith.constant dense<0.000000e+00> : vector<16x8xf32>
    %52 = tpu.matmul %49, %51, %cst_40 {dimension_numbers = #tpu.dot_dimension_numbers<[1], [0], [0], [1], [0, 0, 1, 1], [], []>} : vector<16x16xf32>, vector<16x8xf32>, vector<16x8xf32> -> vector<16x8xf32>
    %c2_41 = arith.constant 2 : index
    %c0_42 = arith.constant 0 : index
    %c0_43 = arith.constant 0 : index
    %53 = vector.load %arg5[%c2_41, %c0_42, %c0_43] : memref<4x1x8xf32, #tpu.memory_space<vmem>>, vector<1x1x8xf32>
    %54 = vector.shape_cast %53 : vector<1x1x8xf32> to vector<1x8xf32>
    %55 = vector.broadcast %54 : vector<1x8xf32> to vector<16x8xf32>
    %56 = arith.addf %52, %55 : vector<16x8xf32>
    %cst_44 = arith.constant 0.000000e+00 : f32
    %57 = vector.broadcast %cst_44 : f32 to vector<16x8xf32>
    %58 = arith.maximumf %56, %57 : vector<16x8xf32>
    %c2_45 = arith.constant 2 : index
    %c0_46 = arith.constant 0 : index
    %c0_47 = arith.constant 0 : index
    %59 = vector.load %arg6[%c2_45, %c0_46, %c0_47] : memref<4x8x4xf32, #tpu.memory_space<vmem>>, vector<1x8x4xf32>
    %60 = vector.shape_cast %59 : vector<1x8x4xf32> to vector<8x4xf32>
    %cst_48 = arith.constant dense<0.000000e+00> : vector<16x4xf32>
    %61 = tpu.matmul %58, %60, %cst_48 {dimension_numbers = #tpu.dot_dimension_numbers<[1], [0], [0], [1], [0, 0, 1, 1], [], []>} : vector<16x8xf32>, vector<8x4xf32>, vector<16x4xf32> -> vector<16x4xf32>
    %c2_49 = arith.constant 2 : index
    %c0_50 = arith.constant 0 : index
    %c0_51 = arith.constant 0 : index
    %62 = vector.load %arg7[%c2_49, %c0_50, %c0_51] : memref<4x1x4xf32, #tpu.memory_space<vmem>>, vector<1x1x4xf32>
    %63 = vector.shape_cast %62 : vector<1x1x4xf32> to vector<1x4xf32>
    %64 = vector.broadcast %63 : vector<1x4xf32> to vector<16x4xf32>
    %65 = arith.addf %61, %64 : vector<16x4xf32>
    %66 = arith.mulf %65, %65 : vector<16x4xf32>
    %cst_52 = arith.constant dense<0.000000e+00> : vector<16xf32>
    %67 = vector.multi_reduction <add>, %66, %cst_52 [1] : vector<16x4xf32> to vector<16xf32>
    %68 = vector.shape_cast %67 : vector<16xf32> to vector<16x1xf32>
    %69 = math.rsqrt %68 : vector<16x1xf32>
    %70 = vector.broadcast %69 : vector<16x1xf32> to vector<16x4xf32>
    %71 = arith.mulf %65, %70 : vector<16x4xf32>
    %c0_53 = arith.constant 0 : index
    %c0_54 = arith.constant 0 : index
    %72 = vector.load %arg3[%c0_53, %c0_54] : memref<16x256xf32, #tpu.memory_space<vmem>>, vector<16x256xf32>
    %cst_55 = arith.constant dense<0.000000e+00> : vector<16x16xf32>
    %73 = tpu.matmul %72, %72, %cst_55 {dimension_numbers = #tpu.dot_dimension_numbers<[1], [1], [0], [0], [0, 0, 1, 0], [], []>} : vector<16x256xf32>, vector<16x256xf32>, vector<16x16xf32> -> vector<16x16xf32>
    %c3 = arith.constant 3 : index
    %c0_56 = arith.constant 0 : index
    %c0_57 = arith.constant 0 : index
    %74 = vector.load %arg4[%c3, %c0_56, %c0_57] : memref<4x16x8xf32, #tpu.memory_space<vmem>>, vector<1x16x8xf32>
    %75 = vector.shape_cast %74 : vector<1x16x8xf32> to vector<16x8xf32>
    %cst_58 = arith.constant dense<0.000000e+00> : vector<16x8xf32>
    %76 = tpu.matmul %73, %75, %cst_58 {dimension_numbers = #tpu.dot_dimension_numbers<[1], [0], [0], [1], [0, 0, 1, 1], [], []>} : vector<16x16xf32>, vector<16x8xf32>, vector<16x8xf32> -> vector<16x8xf32>
    %c3_59 = arith.constant 3 : index
    %c0_60 = arith.constant 0 : index
    %c0_61 = arith.constant 0 : index
    %77 = vector.load %arg5[%c3_59, %c0_60, %c0_61] : memref<4x1x8xf32, #tpu.memory_space<vmem>>, vector<1x1x8xf32>
    %78 = vector.shape_cast %77 : vector<1x1x8xf32> to vector<1x8xf32>
    %79 = vector.broadcast %78 : vector<1x8xf32> to vector<16x8xf32>
    %80 = arith.addf %76, %79 : vector<16x8xf32>
    %cst_62 = arith.constant 0.000000e+00 : f32
    %81 = vector.broadcast %cst_62 : f32 to vector<16x8xf32>
    %82 = arith.maximumf %80, %81 : vector<16x8xf32>
    %c3_63 = arith.constant 3 : index
    %c0_64 = arith.constant 0 : index
    %c0_65 = arith.constant 0 : index
    %83 = vector.load %arg6[%c3_63, %c0_64, %c0_65] : memref<4x8x4xf32, #tpu.memory_space<vmem>>, vector<1x8x4xf32>
    %84 = vector.shape_cast %83 : vector<1x8x4xf32> to vector<8x4xf32>
    %cst_66 = arith.constant dense<0.000000e+00> : vector<16x4xf32>
    %85 = tpu.matmul %82, %84, %cst_66 {dimension_numbers = #tpu.dot_dimension_numbers<[1], [0], [0], [1], [0, 0, 1, 1], [], []>} : vector<16x8xf32>, vector<8x4xf32>, vector<16x4xf32> -> vector<16x4xf32>
    %c3_67 = arith.constant 3 : index
    %c0_68 = arith.constant 0 : index
    %c0_69 = arith.constant 0 : index
    %86 = vector.load %arg7[%c3_67, %c0_68, %c0_69] : memref<4x1x4xf32, #tpu.memory_space<vmem>>, vector<1x1x4xf32>
    %87 = vector.shape_cast %86 : vector<1x1x4xf32> to vector<1x4xf32>
    %88 = vector.broadcast %87 : vector<1x4xf32> to vector<16x4xf32>
    %89 = arith.addf %85, %88 : vector<16x4xf32>
    %90 = arith.mulf %89, %89 : vector<16x4xf32>
    %cst_70 = arith.constant dense<0.000000e+00> : vector<16xf32>
    %91 = vector.multi_reduction <add>, %90, %cst_70 [1] : vector<16x4xf32> to vector<16xf32>
    %92 = vector.shape_cast %91 : vector<16xf32> to vector<16x1xf32>
    %93 = math.rsqrt %92 : vector<16x1xf32>
    %94 = vector.broadcast %93 : vector<16x1xf32> to vector<16x4xf32>
    %95 = arith.mulf %89, %94 : vector<16x4xf32>
    %96 = arith.mulf %23, %71 : vector<16x4xf32>
    %cst_71 = arith.constant dense<0.000000e+00> : vector<16xf32>
    %97 = vector.multi_reduction <add>, %96, %cst_71 [1] : vector<16x4xf32> to vector<16xf32>
    %98 = vector.shape_cast %97 : vector<16xf32> to vector<16x1xf32>
    %99 = arith.mulf %23, %95 : vector<16x4xf32>
    %cst_72 = arith.constant dense<0.000000e+00> : vector<16xf32>
    %100 = vector.multi_reduction <add>, %99, %cst_72 [1] : vector<16x4xf32> to vector<16xf32>
    %101 = vector.shape_cast %100 : vector<16xf32> to vector<16x1xf32>
    %102 = tpu.concatenate %98, %101 in 1 : vector<16x1xf32>, vector<16x1xf32> -> vector<16x2xf32>
    %cst_73 = arith.constant 2.500000e-01 : f32
    %103 = vector.broadcast %cst_73 : f32 to vector<16x2xf32>
    %104 = arith.mulf %102, %103 : vector<16x2xf32>
    %cst_74 = arith.constant dense<0xFF800000> : vector<16xf32>
    %105 = vector.multi_reduction <maximumf>, %104, %cst_74 [1] : vector<16x2xf32> to vector<16xf32>
    %106 = vector.shape_cast %105 : vector<16xf32> to vector<16x1xf32>
    %107 = vector.broadcast %106 : vector<16x1xf32> to vector<16x2xf32>
    %108 = arith.subf %104, %107 : vector<16x2xf32>
    %109 = math.exp %108 : vector<16x2xf32>
    %cst_75 = arith.constant dense<0.000000e+00> : vector<16xf32>
    %110 = vector.multi_reduction <add>, %109, %cst_75 [1] : vector<16x2xf32> to vector<16xf32>
    %111 = vector.shape_cast %110 : vector<16xf32> to vector<16x1xf32>
    %112 = vector.broadcast %111 : vector<16x1xf32> to vector<16x2xf32>
    %113 = arith.divf %109, %112 : vector<16x2xf32>
    %114 = arith.mulf %47, %71 : vector<16x4xf32>
    %cst_76 = arith.constant dense<0.000000e+00> : vector<16xf32>
    %115 = vector.multi_reduction <add>, %114, %cst_76 [1] : vector<16x4xf32> to vector<16xf32>
    %116 = vector.shape_cast %115 : vector<16xf32> to vector<16x1xf32>
    %117 = arith.mulf %47, %95 : vector<16x4xf32>
    %cst_77 = arith.constant dense<0.000000e+00> : vector<16xf32>
    %118 = vector.multi_reduction <add>, %117, %cst_77 [1] : vector<16x4xf32> to vector<16xf32>
    %119 = vector.shape_cast %118 : vector<16xf32> to vector<16x1xf32>
    %120 = tpu.concatenate %116, %119 in 1 : vector<16x1xf32>, vector<16x1xf32> -> vector<16x2xf32>
    %cst_78 = arith.constant 2.500000e-01 : f32
    %121 = vector.broadcast %cst_78 : f32 to vector<16x2xf32>
    %122 = arith.mulf %120, %121 : vector<16x2xf32>
    %cst_79 = arith.constant dense<0xFF800000> : vector<16xf32>
    %123 = vector.multi_reduction <maximumf>, %122, %cst_79 [1] : vector<16x2xf32> to vector<16xf32>
    %124 = vector.shape_cast %123 : vector<16xf32> to vector<16x1xf32>
    %125 = vector.broadcast %124 : vector<16x1xf32> to vector<16x2xf32>
    %126 = arith.subf %122, %125 : vector<16x2xf32>
    %127 = math.exp %126 : vector<16x2xf32>
    %cst_80 = arith.constant dense<0.000000e+00> : vector<16xf32>
    %128 = vector.multi_reduction <add>, %127, %cst_80 [1] : vector<16x2xf32> to vector<16xf32>
    %129 = vector.shape_cast %128 : vector<16xf32> to vector<16x1xf32>
    %130 = vector.broadcast %129 : vector<16x1xf32> to vector<16x2xf32>
    %131 = arith.divf %127, %130 : vector<16x2xf32>
    %132 = tpu.concatenate %113, %131 in 1 : vector<16x2xf32>, vector<16x2xf32> -> vector<16x4xf32>
    %c0_81 = arith.constant 0 : index
    %c0_82 = arith.constant 0 : index
    %133 = vector.load %arg8[%c0_81, %c0_82] : memref<16x4xf32, #tpu.memory_space<vmem>>, vector<16x4xf32>
    tpu.vector_store %arg8[%c0_81, %c0_82], %132 {strides = array<i32>} : memref<16x4xf32, #tpu.memory_space<vmem>>, vector<16x4xf32>,
    return
  }
}

</mosaic_0001>

<llo_original>
// kernel: tpu_custom_call.1
$region0: #{tpu_custom_call.1}
  #allocation0 [shape = 'u32[]', space=smem, size = 0x4, offset = 0x4, fixed_abs, tag = 'smem constant byte address 0x4 - core index']
  #allocation1 [shape = 'u32[72,128]{1,0:T(1,128)}', space=vmem, size = 0x9000, scoped, tag = 'internal scratch']
  %s0 = inlined_call_operand.vmem [shape: f32[16,384], index: 0, kind: input, shape index: {}]
  %s1 = inlined_call_operand.vmem [shape: f32[16,160], index: 1, kind: input, shape index: {}]
  %s2 = inlined_call_operand.hbm [shape: f32[16,128], index: 2, kind: input, shape index: {}]
  %s3 = inlined_call_operand.vmem [shape: f32[16,256], index: 3, kind: input, shape index: {}]
  %s4 = inlined_call_operand.vmem [shape: f32[4,16,8], index: 4, kind: input, shape index: {}]
  %s5 = inlined_call_operand.hbm [shape: f32[4,1,8], index: 5, kind: input, shape index: {}]
  %s6 = inlined_call_operand.vmem [shape: f32[4,8,4], index: 6, kind: input, shape index: {}]
  %s7 = inlined_call_operand.vmem [shape: f32[4,1,4], index: 7, kind: input, shape index: {}]
  %s8 = inlined_call_operand.vmem [shape: f32[16,4], index: 8, kind: output, shape index: {}]
  %s9 = sld [smem:[#allocation0]]
  $region50: #{tpu_custom_call.1} parent=0
    _
  %s11 = ssub.s32 1, %s9
  %s12 = scalar_select 0, %s11, %s9
  $region1: #{tpu_custom_call.1} parent=0
    #allocation2 [shape = 'u8[8192]{0}', space=vmem, size = 0x2000, scoped, tag = 'input window, operand 2, single buffered']
    #allocation3 [shape = 's32[1]{0}', space=sflag, size = 0x4, scoped, tag = 'scoped memory for tpu_custom_call.1']
    #allocation4 [shape = 'u8[2048]{0}', space=vmem, size = 0x800, scoped, tag = 'input window, operand 5, single buffered']
    #allocation5 [shape = 's32[1]{0}', space=sflag, size = 0x4, scoped, tag = 'scoped memory for tpu_custom_call.1']
    %13 = vsyncpa [#allocation3], 0
    %14 = vsyncpa [#allocation5], 0
    // Predicated region
    $region2: #{tpu_custom_call.1} parent=1 // pred_check
      _
    $region3: #{tpu_custom_call.1} parent=1 // pred_check_branch
      %16 = sbr.rel (0) target = $region5
    $region4: #{tpu_custom_call.1} parent=1 // pred_region
      _
    $region5: #{tpu_custom_call.1} parent=1 // pred_fallthru
      _
    // Predicated region
    $region6: #{tpu_custom_call.1} parent=1 // pred_check
      _
    $region7: #{tpu_custom_call.1} parent=1 // pred_check_branch
      %18 = sbr.rel (0) target = $region9
    $region8: #{tpu_custom_call.1} parent=1 // pred_region
      _
    $region9: #{tpu_custom_call.1} parent=1 // pred_fallthru
      _
    // Predicated region
    $region10: #{tpu_custom_call.1} parent=1 // pred_check
      _
    $region11: #{tpu_custom_call.1} parent=1 // pred_check_branch
      %20 = sbr.rel (0) target = $region13
    $region12: #{tpu_custom_call.1} parent=1 // pred_region
      %22 = vsyncadd [#allocation3], 0
      %s23 = sshll.u32 %s2, 4
      %s24 = int_to_ptr.hbm [resolvable:$true] %s23
      %s25 = sshll.u32 [#allocation2], 4
      %s26 = int_to_ptr.vmem [resolvable:$true] %s25
      %31 = dma.hbm_to_vmem [thread:$0]  %s24, 256, %s26, [#allocation3], 128, 128, 8
    $region13: #{tpu_custom_call.1} parent=1 // pred_fallthru
      _
    // Predicated region
    $region14: #{tpu_custom_call.1} parent=1 // pred_check
      _
    $region15: #{tpu_custom_call.1} parent=1 // pred_check_branch
      %33 = sbr.rel (0) target = $region17
    $region16: #{tpu_custom_call.1} parent=1 // pred_region
      _
    $region17: #{tpu_custom_call.1} parent=1 // pred_fallthru
      _
    // Predicated region
    $region18: #{tpu_custom_call.1} parent=1 // pred_check
      _
    $region19: #{tpu_custom_call.1} parent=1 // pred_check_branch
      %35 = sbr.rel (0) target = $region21
    $region20: #{tpu_custom_call.1} parent=1 // pred_region
      _
    $region21: #{tpu_custom_call.1} parent=1 // pred_fallthru
      _
    // Predicated region
    $region22: #{tpu_custom_call.1} parent=1 // pred_check
      _
    $region23: #{tpu_custom_call.1} parent=1 // pred_check_branch
      %37 = sbr.rel (0) target = $region25
    $region24: #{tpu_custom_call.1} parent=1 // pred_region
      %39 = vsyncadd [#allocation5], 0
      %s40 = sshll.u32 %s5, 4
      %s41 = int_to_ptr.hbm [resolvable:$true] %s40
      %s42 = sshll.u32 [#allocation4], 4
      %s43 = int_to_ptr.vmem [resolvable:$true] %s42
      %48 = dma.hbm_to_vmem [thread:$0]  %s41, 64, %s43, [#allocation5], 16, 16, 1
    $region25: #{tpu_custom_call.1} parent=1 // pred_fallthru
      _
    // Predicated region
    $region26: #{tpu_custom_call.1} parent=1 // pred_check
      _
    $region27: #{tpu_custom_call.1} parent=1 // pred_check_branch
      %50 = sbr.rel (0) target = $region29
    $region28: #{tpu_custom_call.1} parent=1 // pred_region
      _
    $region29: #{tpu_custom_call.1} parent=1 // pred_fallthru
      _
    // Predicated region
    $region30: #{tpu_custom_call.1} parent=1 // pred_check
      _
    $region31: #{tpu_custom_call.1} parent=1 // pred_check_branch
      %52 = sbr.rel (0) target = $region33
    $region32: #{tpu_custom_call.1} parent=1 // pred_region
      _
    $region33: #{tpu_custom_call.1} parent=1 // pred_fallthru
      _
    // Predicated region
    $region34: #{tpu_custom_call.1} parent=1 // pred_check
      _
    $region35: #{tpu_custom_call.1} parent=1 // pred_check_branch
      %54 = sbr.rel (0) target = $region37
    $region36: #{tpu_custom_call.1} parent=1 // pred_region
      %56 = dma.done [#allocation3], 256
    $region37: #{tpu_custom_call.1} parent=1 // pred_fallthru
      _
    // Predicated region
    $region38: #{tpu_custom_call.1} parent=1 // pred_check
      _
    $region39: #{tpu_custom_call.1} parent=1 // pred_check_branch
      %58 = sbr.rel (0) target = $region41
    $region40: #{tpu_custom_call.1} parent=1 // pred_region
      %60 = dma.done [#allocation5], 64
    $region41: #{tpu_custom_call.1} parent=1 // pred_fallthru
      _
    %v61 = vld [vmem:[%s0] sm:$0xff]
    %v62 = vld [vmem:[%s0 + $0x8] sm:$0xff]
    %v63 = vld [vmem:[%s0 + $0x10] sm:$0xff]
    %v64 = vld [vmem:[%s0 + $0x18] sm:$0xff]
    %v65 = vld [vmem:[%s0 + $0x20] sm:$0xff]
    %v66 = vld [vmem:[%s0 + $0x28] sm:$0xff]
    %67 = vmatpush.xpose.msra.mxu0 0.0
    %68 = vmatpush.xpose.msra.mxu0 0.0
    %69 = vmatpush.xpose.msra.mxu0 0.0
    %70 = vmatpush.xpose.msra.mxu0 0.0
    %71 = vmatpush.xpose.msra.mxu0 0.0
    %72 = vmatpush.xpose.msra.mxu0 0.0
    %73 = vmatpush.xpose.msra.mxu0 0.0
    %74 = vmatpush.xpose.msra.mxu0 0.0
    %75 = vmatpush.xpose.msra.mxu0 0.0
    %76 = vmatpush.xpose.msra.mxu0 0.0
    %77 = vmatpush.xpose.msra.mxu0 0.0
    %78 = vmatpush.xpose.msra.mxu0 0.0
    %79 = vmatpush.xpose.msra.mxu0 0.0
    %80 = vmatpush.xpose.msra.mxu0 0.0
    %81 = vmatpush.xpose.msra.mxu0 %v64
    %82 = vmatpush.xpose.msra.mxu0 %v61
    %83 = vmatmul.f32.gmra.mxu0 %v61
    %v84 = vpop.f32.mrf.mxu0
    %v85 = vadd.f32 0.0, %v84
    %86 = vmatmul.f32.gmra.mxu0 %v64
    %v87 = vpop.f32.mrf.mxu0
    %v88 = vadd.f32 0.0, %v87
    %89 = vdwg.mxu0
    %90 = vmatpush.xpose.msra.mxu0 0.0
    %91 = vmatpush.xpose.msra.mxu0 0.0
    %92 = vmatpush.xpose.msra.mxu0 0.0
    %93 = vmatpush.xpose.msra.mxu0 0.0
    %94 = vmatpush.xpose.msra.mxu0 0.0
    %95 = vmatpush.xpose.msra.mxu0 0.0
    %96 = vmatpush.xpose.msra.mxu0 0.0
    %97 = vmatpush.xpose.msra.mxu0 0.0
    %98 = vmatpush.xpose.msra.mxu0 0.0
    %99 = vmatpush.xpose.msra.mxu0 0.0
    %100 = vmatpush.xpose.msra.mxu0 0.0
    %101 = vmatpush.xpose.msra.mxu0 0.0
    %102 = vmatpush.xpose.msra.mxu0 0.0
    %103 = vmatpush.xpose.msra.mxu0 0.0
    %104 = vmatpush.xpose.msra.mxu0 %v65
    %105 = vmatpush.xpose.msra.mxu0 %v62
    %106 = vmatmul.f32.gmra.mxu0 %v62
    %v107 = vpop.f32.mrf.mxu0
    %v108 = vadd.f32 %v85, %v107
    %109 = vmatmul.f32.gmra.mxu0 %v65
    %v110 = vpop.f32.mrf.mxu0
    %v111 = vadd.f32 %v88, %v110
    %112 = vdwg.mxu0
    %113 = vmatpush.xpose.msra.mxu0 0.0
    %114 = vmatpush.xpose.msra.mxu0 0.0
    %115 = vmatpush.xpose.msra.mxu0 0.0
    %116 = vmatpush.xpose.msra.mxu0 0.0
    %117 = vmatpush.xpose.msra.mxu0 0.0
    %118 = vmatpush.xpose.msra.mxu0 0.0
    %119 = vmatpush.xpose.msra.mxu0 0.0
    %120 = vmatpush.xpose.msra.mxu0 0.0
    %121 = vmatpush.xpose.msra.mxu0 0.0
    %122 = vmatpush.xpose.msra.mxu0 0.0
    %123 = vmatpush.xpose.msra.mxu0 0.0
    %124 = vmatpush.xpose.msra.mxu0 0.0
    %125 = vmatpush.xpose.msra.mxu0 0.0
    %126 = vmatpush.xpose.msra.mxu0 0.0
    %127 = vmatpush.xpose.msra.mxu0 %v66
    %128 = vmatpush.xpose.msra.mxu0 %v63
    %129 = vmatmul.f32.gmra.mxu0 %v63
    %v130 = vpop.f32.mrf.mxu0
    %v131 = vadd.f32 %v108, %v130
    %132 = vmatmul.f32.gmra.mxu0 %v66
    %v133 = vpop.f32.mrf.mxu0
    %v134 = vadd.f32 %v111, %v133
    %135 = vdwg.mxu0
    %v136 = vld [vmem:[%s4] sm:$0xff]
    %v137 = vld [vmem:[%s4 + $0x8] sm:$0xff]
    %v138 = vld [vmem:[#allocation4] sm:$0x1]
    %v140 = vperm.slane %v138, 0
    %vm142 = vcmask 130048
    %v144 = vsel %vm142, %v131, 0
    %v147 = vsel %vm142, %v134, 0
    %149 = vmatpush.msra.mxu0 0.0
    %150 = vmatpush.msra.mxu0 0.0
    %151 = vmatpush.msra.mxu0 0.0
    %152 = vmatpush.msra.mxu0 0.0
    %153 = vmatpush.msra.mxu0 0.0
    %154 = vmatpush.msra.mxu0 0.0
    %155 = vmatpush.msra.mxu0 0.0
    %156 = vmatpush.msra.mxu0 0.0
    %157 = vmatpush.msra.mxu0 0.0
    %158 = vmatpush.msra.mxu0 0.0
    %159 = vmatpush.msra.mxu0 0.0
    %160 = vmatpush.msra.mxu0 0.0
    %161 = vmatpush.msra.mxu0 0.0
    %162 = vmatpush.msra.mxu0 0.0
    %163 = vmatpush.msra.mxu0 %v137
    %164 = vmatpush.msra.mxu0 %v136
    %165 = vmatmul.f32.gmra.mxu0 %v144
    %v166 = vpop.f32.mrf.mxu0
    %v167 = vadd.f32 %v140, %v166
    %168 = vmatmul.f32.gmra.mxu0 %v147
    %v169 = vpop.f32.mrf.mxu0
    %v170 = vadd.f32 %v140, %v169
    %171 = vdwg.mxu0
    %v172 = vmax.f32 %v167, 0.0
    %v173 = vmax.f32 %v170, 0.0
    %v174 = vld [vmem:[%s6] sm:$0xff]
    %v175 = vld [vmem:[%s7] sm:$0x1]
    %v177 = vperm.slane %v175, 0
    %vm179 = vcmask 64512
    %v181 = vsel %vm179, %v172, 0
    %v184 = vsel %vm179, %v173, 0
    %186 = vmatpush.msra.mxu0 0.0
    %187 = vmatpush.msra.mxu0 0.0
    %188 = vmatpush.msra.mxu0 0.0
    %189 = vmatpush.msra.mxu0 0.0
    %190 = vmatpush.msra.mxu0 0.0
    %191 = vmatpush.msra.mxu0 0.0
    %192 = vmatpush.msra.mxu0 0.0
    %193 = vmatpush.msra.mxu0 0.0
    %194 = vmatpush.msra.mxu0 0.0
    %195 = vmatpush.msra.mxu0 0.0
    %196 = vmatpush.msra.mxu0 0.0
    %197 = vmatpush.msra.mxu0 0.0
    %198 = vmatpush.msra.mxu0 0.0
    %199 = vmatpush.msra.mxu0 0.0
    %200 = vmatpush.msra.mxu0 0.0
    %201 = vmatpush.msra.mxu0 %v174
    %202 = vmatmul.f32.gmra.mxu0 %v181
    %v203 = vpop.f32.mrf.mxu0
    %v204 = vadd.f32 %v177, %v203
    %205 = vmatmul.f32.gmra.mxu0 %v184
    %v206 = vpop.f32.mrf.mxu0
    %v207 = vadd.f32 %v177, %v206
    %208 = vdwg.mxu0
    %v209 = vmul.f32 %v204, %v204
    %v210 = vmul.f32 %v207, %v207
    %vm211 = vcmask 31744
    %v212 = vsel %vm211, %v209, 0.0
    %213 = vadd.xlane.f32.xlu0 %v212
    %v214 = vpop.xlane.xlu0 %213
    %v215 = vsel %vm211, %v210, 0.0
    %216 = vadd.xlane.f32.xlu0 %v215
    %v217 = vpop.xlane.xlu0 %216
    %v218 = vrsqrt.pop %v214
    %v219 = vmul.f32 %v218, %v214
    %v220 = vmul.f32 %v219, %v218
    %v221 = vmul.f32 0.5, %v220
    %v222 = vsub.f32 1.5, %v221
    %v223 = vmul.f32 %v218, %v222
    %vm224 = vweird.f32 %v214
    %vm225 = vweird.f32 %v218
    %vm226 = vmor %vm224, %vm225
    %v227 = vsel %vm226, %v218, %v223
    %v228 = vrsqrt.pop %v217
    %v229 = vmul.f32 %v228, %v217
    %v230 = vmul.f32 %v229, %v228
    %v231 = vmul.f32 0.5, %v230
    %v232 = vsub.f32 1.5, %v231
    %v233 = vmul.f32 %v228, %v232
    %vm234 = vweird.f32 %v217
    %vm235 = vweird.f32 %v228
    %vm236 = vmor %vm234, %vm235
    %v237 = vsel %vm236, %v228, %v233
    %v238 = vmul.f32 %v204, %v227
    %v239 = vmul.f32 %v207, %v237
    %v240 = vld [vmem:[%s1] sm:$0xff]
    %v241 = vld [vmem:[%s1 + $0x8] sm:$0xff]
    %v242 = vld [vmem:[%s1 + $0x10] sm:$0xff]
    %v243 = vld [vmem:[%s1 + $0x18] sm:$0xff]
    %vm244 = vcmask 261120
    %v246 = vsel %vm244, %v241, 0
    %v249 = vsel %vm244, %v243, 0
    %251 = vmatpush.xpose.msra.mxu0 0.0
    %252 = vmatpush.xpose.msra.mxu0 0.0
    %253 = vmatpush.xpose.msra.mxu0 0.0
    %254 = vmatpush.xpose.msra.mxu0 0.0
    %255 = vmatpush.xpose.msra.mxu0 0.0
    %256 = vmatpush.xpose.msra.mxu0 0.0
    %257 = vmatpush.xpose.msra.mxu0 0.0
    %258 = vmatpush.xpose.msra.mxu0 0.0
    %259 = vmatpush.xpose.msra.mxu0 0.0
    %260 = vmatpush.xpose.msra.mxu0 0.0
    %261 = vmatpush.xpose.msra.mxu0 0.0
    %262 = vmatpush.xpose.msra.mxu0 0.0
    %263 = vmatpush.xpose.msra.mxu0 0.0
    %264 = vmatpush.xpose.msra.mxu0 0.0
    %265 = vmatpush.xpose.msra.mxu0 %v242
    %266 = vmatpush.xpose.msra.mxu0 %v240
    %267 = vmatmul.f32.gmra.mxu0 %v240
    %v268 = vpop.f32.mrf.mxu0
    %v269 = vadd.f32 0.0, %v268
    %270 = vmatmul.f32.gmra.mxu0 %v242
    %v271 = vpop.f32.mrf.mxu0
    %v272 = vadd.f32 0.0, %v271
    %273 = vdwg.mxu0
    %274 = vmatpush.xpose.msra.mxu0 0.0
    %275 = vmatpush.xpose.msra.mxu0 0.0
    %276 = vmatpush.xpose.msra.mxu0 0.0
    %277 = vmatpush.xpose.msra.mxu0 0.0
    %278 = vmatpush.xpose.msra.mxu0 0.0
    %279 = vmatpush.xpose.msra.mxu0 0.0
    %280 = vmatpush.xpose.msra.mxu0 0.0
    %281 = vmatpush.xpose.msra.mxu0 0.0
    %282 = vmatpush.xpose.msra.mxu0 0.0
    %283 = vmatpush.xpose.msra.mxu0 0.0
    %284 = vmatpush.xpose.msra.mxu0 0.0
    %285 = vmatpush.xpose.msra.mxu0 0.0
    %286 = vmatpush.xpose.msra.mxu0 0.0
    %287 = vmatpush.xpose.msra.mxu0 0.0
    %288 = vmatpush.xpose.msra.mxu0 %v249
    %289 = vmatpush.xpose.msra.mxu0 %v246
    %290 = vmatmul.f32.gmra.mxu0 %v246
    %v291 = vpop.f32.mrf.mxu0
    %v292 = vadd.f32 %v269, %v291
    %293 = vmatmul.f32.gmra.mxu0 %v249
    %v294 = vpop.f32.mrf.mxu0
    %v295 = vadd.f32 %v272, %v294
    %296 = vdwg.mxu0
    %s297 = scalar_lea.vmem %s4, 16
    %v298 = vld [vmem:[%s297] sm:$0xff]
    %v299 = vld [vmem:[%s297 + $0x8] sm:$0xff]
    %s300 = scalar_lea.vmem [#allocation4], 1
    %v301 = vld [vmem:[%s300] sm:$0x1]
    %v303 = vperm.slane %v301, 0
    %v306 = vsel %vm142, %v292, 0
    %v309 = vsel %vm142, %v295, 0
    %311 = vmatpush.msra.mxu0 0.0
    %312 = vmatpush.msra.mxu0 0.0
    %313 = vmatpush.msra.mxu0 0.0
    %314 = vmatpush.msra.mxu0 0.0
    %315 = vmatpush.msra.mxu0 0.0
    %316 = vmatpush.msra.mxu0 0.0
    %317 = vmatpush.msra.mxu0 0.0
    %318 = vmatpush.msra.mxu0 0.0
    %319 = vmatpush.msra.mxu0 0.0
    %320 = vmatpush.msra.mxu0 0.0
    %321 = vmatpush.msra.mxu0 0.0
    %322 = vmatpush.msra.mxu0 0.0
    %323 = vmatpush.msra.mxu0 0.0
    %324 = vmatpush.msra.mxu0 0.0
    %325 = vmatpush.msra.mxu0 %v299
    %326 = vmatpush.msra.mxu0 %v298
    %327 = vmatmul.f32.gmra.mxu0 %v306
    %v328 = vpop.f32.mrf.mxu0
    %v329 = vadd.f32 %v303, %v328
    %330 = vmatmul.f32.gmra.mxu0 %v309
    %v331 = vpop.f32.mrf.mxu0
    %v332 = vadd.f32 %v303, %v331
    %333 = vdwg.mxu0
    %v334 = vmax.f32 %v329, 0.0
    %v335 = vmax.f32 %v332, 0.0
    %s336 = scalar_lea.vmem %s6, 8
    %v337 = vld [vmem:[%s336] sm:$0xff]
    %s338 = scalar_lea.vmem %s7, 1
    %v339 = vld [vmem:[%s338] sm:$0x1]
    %v341 = vperm.slane %v339, 0
    %v344 = vsel %vm179, %v334, 0
    %v347 = vsel %vm179, %v335, 0
    %349 = vmatpush.msra.mxu0 0.0
    %350 = vmatpush.msra.mxu0 0.0
    %351 = vmatpush.msra.mxu0 0.0
    %352 = vmatpush.msra.mxu0 0.0
    %353 = vmatpush.msra.mxu0 0.0
    %354 = vmatpush.msra.mxu0 0.0
    %355 = vmatpush.msra.mxu0 0.0
    %356 = vmatpush.msra.mxu0 0.0
    %357 = vmatpush.msra.mxu0 0.0
    %358 = vmatpush.msra.mxu0 0.0
    %359 = vmatpush.msra.mxu0 0.0
    %360 = vmatpush.msra.mxu0 0.0
    %361 = vmatpush.msra.mxu0 0.0
    %362 = vmatpush.msra.mxu0 0.0
    %363 = vmatpush.msra.mxu0 0.0
    %364 = vmatpush.msra.mxu0 %v337
    %365 = vmatmul.f32.gmra.mxu0 %v344
    %v366 = vpop.f32.mrf.mxu0
    %v367 = vadd.f32 %v341, %v366
    %368 = vmatmul.f32.gmra.mxu0 %v347
    %v369 = vpop.f32.mrf.mxu0
    %v370 = vadd.f32 %v341, %v369
    %371 = vdwg.mxu0
    %v372 = vmul.f32 %v367, %v367
    %v373 = vmul.f32 %v370, %v370
    %v374 = vsel %vm211, %v372, 0.0
    %375 = vadd.xlane.f32.xlu0 %v374
    %v376 = vpop.xlane.xlu0 %375
    %v377 = vsel %vm211, %v373, 0.0
    %378 = vadd.xlane.f32.xlu0 %v377
    %v379 = vpop.xlane.xlu0 %378
    %v380 = vrsqrt.pop %v376
    %v381 = vmul.f32 %v380, %v376
    %v382 = vmul.f32 %v381, %v380
    %v383 = vmul.f32 0.5, %v382
    %v384 = vsub.f32 1.5, %v383
    %v385 = vmul.f32 %v380, %v384
    %vm386 = vweird.f32 %v376
    %vm387 = vweird.f32 %v380
    %vm388 = vmor %vm386, %vm387
    %v389 = vsel %vm388, %v380, %v385
    %v390 = vrsqrt.pop %v379
    %v391 = vmul.f32 %v390, %v379
    %v392 = vmul.f32 %v391, %v390
    %v393 = vmul.f32 0.5, %v392
    %v394 = vsub.f32 1.5, %v393
    %v395 = vmul.f32 %v390, %v394
    %vm396 = vweird.f32 %v379
    %vm397 = vweird.f32 %v390
    %vm398 = vmor %vm396, %vm397
    %v399 = vsel %vm398, %v390, %v395
    %v400 = vmul.f32 %v367, %v389
    %v401 = vmul.f32 %v370, %v399
    %v402 = vld [vmem:[#allocation2] sm:$0xff]
    %v403 = vld [vmem:[#allocation2 + $0x8] sm:$0xff]
    %404 = vmatpush.xpose.msra.mxu0 0.0
    %405 = vmatpush.xpose.msra.mxu0 0.0
    %406 = vmatpush.xpose.msra.mxu0 0.0
    %407 = vmatpush.xpose.msra.mxu0 0.0
    %408 = vmatpush.xpose.msra.mxu0 0.0
    %409 = vmatpush.xpose.msra.mxu0 0.0
    %410 = vmatpush.xpose.msra.mxu0 0.0
    %411 = vmatpush.xpose.msra.mxu0 0.0
    %412 = vmatpush.xpose.msra.mxu0 0.0
    %413 = vmatpush.xpose.msra.mxu0 0.0
    %414 = vmatpush.xpose.msra.mxu0 0.0
    %415 = vmatpush.xpose.msra.mxu0 0.0
    %416 = vmatpush.xpose.msra.mxu0 0.0
    %417 = vmatpush.xpose.msra.mxu0 0.0
    %418 = vmatpush.xpose.msra.mxu0 %v403
    %419 = vmatpush.xpose.msra.mxu0 %v402
    %420 = vmatmul.f32.gmra.mxu0 %v402
    %v421 = vpop.f32.mrf.mxu0
    %v422 = vadd.f32 0.0, %v421
    %423 = vmatmul.f32.gmra.mxu0 %v403
    %v424 = vpop.f32.mrf.mxu0
    %v425 = vadd.f32 0.0, %v424
    %426 = vdwg.mxu0
    %s427 = scalar_lea.vmem %s4, 32
    %v428 = vld [vmem:[%s427] sm:$0xff]
    %v429 = vld [vmem:[%s427 + $0x8] sm:$0xff]
    %s430 = scalar_lea.vmem [#allocation4], 2
    %v431 = vld [vmem:[%s430] sm:$0x1]
    %v433 = vperm.slane %v431, 0
    %v436 = vsel %vm142, %v422, 0
    %v439 = vsel %vm142, %v425, 0
    %441 = vmatpush.msra.mxu0 0.0
    %442 = vmatpush.msra.mxu0 0.0
    %443 = vmatpush.msra.mxu0 0.0
    %444 = vmatpush.msra.mxu0 0.0
    %445 = vmatpush.msra.mxu0 0.0
    %446 = vmatpush.msra.mxu0 0.0
    %447 = vmatpush.msra.mxu0 0.0
    %448 = vmatpush.msra.mxu0 0.0
    %449 = vmatpush.msra.mxu0 0.0
    %450 = vmatpush.msra.mxu0 0.0
    %451 = vmatpush.msra.mxu0 0.0
    %452 = vmatpush.msra.mxu0 0.0
    %453 = vmatpush.msra.mxu0 0.0
    %454 = vmatpush.msra.mxu0 0.0
    %455 = vmatpush.msra.mxu0 %v429
    %456 = vmatpush.msra.mxu0 %v428
    %457 = vmatmul.f32.gmra.mxu0 %v436
    %v458 = vpop.f32.mrf.mxu0
    %v459 = vadd.f32 %v433, %v458
    %460 = vmatmul.f32.gmra.mxu0 %v439
    %v461 = vpop.f32.mrf.mxu0
    %v462 = vadd.f32 %v433, %v461
    %463 = vdwg.mxu0
    %v464 = vmax.f32 %v459, 0.0
    %v465 = vmax.f32 %v462, 0.0
    %s466 = scalar_lea.vmem %s6, 16
    %v467 = vld [vmem:[%s466] sm:$0xff]
    %s468 = scalar_lea.vmem %s7, 2
    %v469 = vld [vmem:[%s468] sm:$0x1]
    %v471 = vperm.slane %v469, 0
    %v474 = vsel %vm179, %v464, 0
    %v477 = vsel %vm179, %v465, 0
    %479 = vmatpush.msra.mxu0 0.0
    %480 = vmatpush.msra.mxu0 0.0
    %481 = vmatpush.msra.mxu0 0.0
    %482 = vmatpush.msra.mxu0 0.0
    %483 = vmatpush.msra.mxu0 0.0
    %484 = vmatpush.msra.mxu0 0.0
    %485 = vmatpush.msra.mxu0 0.0
    %486 = vmatpush.msra.mxu0 0.0
    %487 = vmatpush.msra.mxu0 0.0
    %488 = vmatpush.msra.mxu0 0.0
    %489 = vmatpush.msra.mxu0 0.0
    %490 = vmatpush.msra.mxu0 0.0
    %491 = vmatpush.msra.mxu0 0.0
    %492 = vmatpush.msra.mxu0 0.0
    %493 = vmatpush.msra.mxu0 0.0
    %494 = vmatpush.msra.mxu0 %v467
    %495 = vmatmul.f32.gmra.mxu0 %v474
    %v496 = vpop.f32.mrf.mxu0
    %v497 = vadd.f32 %v471, %v496
    %498 = vmatmul.f32.gmra.mxu0 %v477
    %v499 = vpop.f32.mrf.mxu0
    %v500 = vadd.f32 %v471, %v499
    %501 = vdwg.mxu0
    %v502 = vmul.f32 %v497, %v497
    %v503 = vmul.f32 %v500, %v500
    %v504 = vsel %vm211, %v502, 0.0
    %505 = vadd.xlane.f32.xlu0 %v504
    %v506 = vpop.xlane.xlu0 %505
    %v507 = vsel %vm211, %v503, 0.0
    %508 = vadd.xlane.f32.xlu0 %v507
    %v509 = vpop.xlane.xlu0 %508
    %v510 = vrsqrt.pop %v506
    %v511 = vmul.f32 %v510, %v506
    %v512 = vmul.f32 %v511, %v510
    %v513 = vmul.f32 0.5, %v512
    %v514 = vsub.f32 1.5, %v513
    %v515 = vmul.f32 %v510, %v514
    %vm516 = vweird.f32 %v506
    %vm517 = vweird.f32 %v510
    %vm518 = vmor %vm516, %vm517
    %v519 = vsel %vm518, %v510, %v515
    %v520 = vrsqrt.pop %v509
    %v521 = vmul.f32 %v520, %v509
    %v522 = vmul.f32 %v521, %v520
    %v523 = vmul.f32 0.5, %v522
    %v524 = vsub.f32 1.5, %v523
    %v525 = vmul.f32 %v520, %v524
    %vm526 = vweird.f32 %v509
    %vm527 = vweird.f32 %v520
    %vm528 = vmor %vm526, %vm527
    %v529 = vsel %vm528, %v520, %v525
    %v530 = vmul.f32 %v497, %v519
    %v531 = vmul.f32 %v500, %v529
    %v532 = vld [vmem:[%s3] sm:$0xff]
    %v533 = vld [vmem:[%s3 + $0x8] sm:$0xff]
    %v534 = vld [vmem:[%s3 + $0x10] sm:$0xff]
    %v535 = vld [vmem:[%s3 + $0x18] sm:$0xff]
    %536 = vmatpush.xpose.msra.mxu0 0.0
    %537 = vmatpush.xpose.msra.mxu0 0.0
    %538 = vmatpush.xpose.msra.mxu0 0.0
    %539 = vmatpush.xpose.msra.mxu0 0.0
    %540 = vmatpush.xpose.msra.mxu0 0.0
    %541 = vmatpush.xpose.msra.mxu0 0.0
    %542 = vmatpush.xpose.msra.mxu0 0.0
    %543 = vmatpush.xpose.msra.mxu0 0.0
    %544 = vmatpush.xpose.msra.mxu0 0.0
    %545 = vmatpush.xpose.msra.mxu0 0.0
    %546 = vmatpush.xpose.msra.mxu0 0.0
    %547 = vmatpush.xpose.msra.mxu0 0.0
    %548 = vmatpush.xpose.msra.mxu0 0.0
    %549 = vmatpush.xpose.msra.mxu0 0.0
    %550 = vmatpush.xpose.msra.mxu0 %v534
    %551 = vmatpush.xpose.msra.mxu0 %v532
    %552 = vmatmul.f32.gmra.mxu0 %v532
    %v553 = vpop.f32.mrf.mxu0
    %v554 = vadd.f32 0.0, %v553
    %555 = vmatmul.f32.gmra.mxu0 %v534
    %v556 = vpop.f32.mrf.mxu0
    %v557 = vadd.f32 0.0, %v556
    %558 = vdwg.mxu0
    %559 = vmatpush.xpose.msra.mxu0 0.0
    %560 = vmatpush.xpose.msra.mxu0 0.0
    %561 = vmatpush.xpose.msra.mxu0 0.0
    %562 = vmatpush.xpose.msra.mxu0 0.0
    %563 = vmatpush.xpose.msra.mxu0 0.0
    %564 = vmatpush.xpose.msra.mxu0 0.0
    %565 = vmatpush.xpose.msra.mxu0 0.0
    %566 = vmatpush.xpose.msra.mxu0 0.0
    %567 = vmatpush.xpose.msra.mxu0 0.0
    %568 = vmatpush.xpose.msra.mxu0 0.0
    %569 = vmatpush.xpose.msra.mxu0 0.0
    %570 = vmatpush.xpose.msra.mxu0 0.0
    %571 = vmatpush.xpose.msra.mxu0 0.0
    %572 = vmatpush.xpose.msra.mxu0 0.0
    %573 = vmatpush.xpose.msra.mxu0 %v535
    %574 = vmatpush.xpose.msra.mxu0 %v533
    %575 = vmatmul.f32.gmra.mxu0 %v533
    %v576 = vpop.f32.mrf.mxu0
    %v577 = vadd.f32 %v554, %v576
    %578 = vmatmul.f32.gmra.mxu0 %v535
    %v579 = vpop.f32.mrf.mxu0
    %v580 = vadd.f32 %v557, %v579
    %581 = vdwg.mxu0
    %s582 = scalar_lea.vmem %s4, 48
    %v583 = vld [vmem:[%s582] sm:$0xff]
    %v584 = vld [vmem:[%s582 + $0x8] sm:$0xff]
    %s585 = scalar_lea.vmem [#allocation4], 3
    %v586 = vld [vmem:[%s585] sm:$0x1]
    %v588 = vperm.slane %v586, 0
    %v591 = vsel %vm142, %v577, 0
    %v594 = vsel %vm142, %v580, 0
    %596 = vmatpush.msra.mxu0 0.0
    %597 = vmatpush.msra.mxu0 0.0
    %598 = vmatpush.msra.mxu0 0.0
    %599 = vmatpush.msra.mxu0 0.0
    %600 = vmatpush.msra.mxu0 0.0
    %601 = vmatpush.msra.mxu0 0.0
    %602 = vmatpush.msra.mxu0 0.0
    %603 = vmatpush.msra.mxu0 0.0
    %604 = vmatpush.msra.mxu0 0.0
    %605 = vmatpush.msra.mxu0 0.0
    %606 = vmatpush.msra.mxu0 0.0
    %607 = vmatpush.msra.mxu0 0.0
    %608 = vmatpush.msra.mxu0 0.0
    %609 = vmatpush.msra.mxu0 0.0
    %610 = vmatpush.msra.mxu0 %v584
    %611 = vmatpush.msra.mxu0 %v583
    %612 = vmatmul.f32.gmra.mxu0 %v591
    %v613 = vpop.f32.mrf.mxu0
    %v614 = vadd.f32 %v588, %v613
    %615 = vmatmul.f32.gmra.mxu0 %v594
    %v616 = vpop.f32.mrf.mxu0
    %v617 = vadd.f32 %v588, %v616
    %618 = vdwg.mxu0
    %v619 = vmax.f32 %v614, 0.0
    %v620 = vmax.f32 %v617, 0.0
    %s621 = scalar_lea.vmem %s6, 24
    %v622 = vld [vmem:[%s621] sm:$0xff]
    %s623 = scalar_lea.vmem %s7, 3
    %v624 = vld [vmem:[%s623] sm:$0x1]
    %v626 = vperm.slane %v624, 0
    %v629 = vsel %vm179, %v619, 0
    %v632 = vsel %vm179, %v620, 0
    %634 = vmatpush.msra.mxu0 0.0
    %635 = vmatpush.msra.mxu0 0.0
    %636 = vmatpush.msra.mxu0 0.0
    %637 = vmatpush.msra.mxu0 0.0
    %638 = vmatpush.msra.mxu0 0.0
    %639 = vmatpush.msra.mxu0 0.0
    %640 = vmatpush.msra.mxu0 0.0
    %641 = vmatpush.msra.mxu0 0.0
    %642 = vmatpush.msra.mxu0 0.0
    %643 = vmatpush.msra.mxu0 0.0
    %644 = vmatpush.msra.mxu0 0.0
    %645 = vmatpush.msra.mxu0 0.0
    %646 = vmatpush.msra.mxu0 0.0
    %647 = vmatpush.msra.mxu0 0.0
    %648 = vmatpush.msra.mxu0 0.0
    %649 = vmatpush.msra.mxu0 %v622
    %650 = vmatmul.f32.gmra.mxu0 %v629
    %v651 = vpop.f32.mrf.mxu0
    %v652 = vadd.f32 %v626, %v651
    %653 = vmatmul.f32.gmra.mxu0 %v632
    %v654 = vpop.f32.mrf.mxu0
    %v655 = vadd.f32 %v626, %v654
    %656 = vdwg.mxu0
    %v657 = vmul.f32 %v652, %v652
    %v658 = vmul.f32 %v655, %v655
    %v659 = vsel %vm211, %v657, 0.0
    %660 = vadd.xlane.f32.xlu0 %v659
    %v661 = vpop.xlane.xlu0 %660
    %v662 = vsel %vm211, %v658, 0.0
    %663 = vadd.xlane.f32.xlu0 %v662
    %v664 = vpop.xlane.xlu0 %663
    %v665 = vrsqrt.pop %v661
    %v666 = vmul.f32 %v665, %v661
    %v667 = vmul.f32 %v666, %v665
    %v668 = vmul.f32 0.5, %v667
    %v669 = vsub.f32 1.5, %v668
    %v670 = vmul.f32 %v665, %v669
    %vm671 = vweird.f32 %v661
    %vm672 = vweird.f32 %v665
    %vm673 = vmor %vm671, %vm672
    %v674 = vsel %vm673, %v665, %v670
    %v675 = vrsqrt.pop %v664
    %v676 = vmul.f32 %v675, %v664
    %v677 = vmul.f32 %v676, %v675
    %v678 = vmul.f32 0.5, %v677
    %v679 = vsub.f32 1.5, %v678
    %v680 = vmul.f32 %v675, %v679
    %vm681 = vweird.f32 %v664
    %vm682 = vweird.f32 %v675
    %vm683 = vmor %vm681, %vm682
    %v684 = vsel %vm683, %v675, %v680
    %v685 = vmul.f32 %v652, %v674
    %v686 = vmul.f32 %v655, %v684
    %v687 = vmul.f32 %v238, %v530
    %v688 = vmul.f32 %v239, %v531
    %v689 = vsel %vm211, %v687, 0.0
    %690 = vadd.xlane.f32.xlu0 %v689
    %v691 = vpop.xlane.xlu0 %690
    %v692 = vsel %vm211, %v688, 0.0
    %693 = vadd.xlane.f32.xlu0 %v692
    %v694 = vpop.xlane.xlu0 %693
    %v695 = vmul.f32 %v238, %v685
    %v696 = vmul.f32 %v239, %v686
    %v697 = vsel %vm211, %v695, 0.0
    %698 = vadd.xlane.f32.xlu0 %v697
    %v699 = vpop.xlane.xlu0 %698
    %v700 = vsel %vm211, %v696, 0.0
    %701 = vadd.xlane.f32.xlu0 %v700
    %v702 = vpop.xlane.xlu0 %701
    %vm703 = vcmask 7168
    %v704 = vsel %vm703, %v691, %v699
    %v705 = vsel %vm703, %v694, %v702
    %v706 = vmul.f32 %v704, 0.25
    %v707 = vmul.f32 %v705, 0.25
    %vm708 = vcmask 15360
    %v709 = vsel %vm708, %v706, -inf
    %710 = vmax.xlane.f32.xlu0 %v709
    %v711 = vpop.xlane.xlu0 %710
    %v712 = vsel %vm708, %v707, -inf
    %713 = vmax.xlane.f32.xlu0 %v712
    %v714 = vpop.xlane.xlu0 %713
    %v715 = vsub.f32 %v706, %v711
    %v716 = vsub.f32 %v707, %v714
    %v717 = vmul.f32 %v715, 1.442695
    %v718 = vpow.pop %v717
    %v719 = vmul.f32 %v716, 1.442695
    %v720 = vpow.pop %v719
    %v721 = vsel %vm708, %v718, 0.0
    %722 = vadd.xlane.f32.xlu0 %v721
    %v723 = vpop.xlane.xlu0 %722
    %v724 = vsel %vm708, %v720, 0.0
    %725 = vadd.xlane.f32.xlu0 %v724
    %v726 = vpop.xlane.xlu0 %725
    %v727 = vrcp.pop %v723
    %v728 = vmul.f32 %v723, %v727
    %v729 = vsub.f32 1.0, %v728
    %v730 = vmul.f32 %v727, %v729
    %v731 = vadd.f32 %v727, %v730
    %vm732 = vweird.f32 %v723
    %vm733 = vweird.f32 %v727
    %vm734 = vmor %vm732, %vm733
    %v735 = vsel %vm734, %v727, %v731
    %v736 = vand.u32 2147483647, %v723
    %vm737 = vcmp.eq.f32.partialorder %v736, 8.507059e+37
    %v738 = vand.u32 %v723, 2147483648
    %v739 = vor.u32 1.1754944e-38, %v738
    %v740 = vsel %vm737, %v739, %v735
    %v741 = vmul.f32 %v718, %v740
    %v742 = vrcp.pop %v726
    %v743 = vmul.f32 %v726, %v742
    %v744 = vsub.f32 1.0, %v743
    %v745 = vmul.f32 %v742, %v744
    %v746 = vadd.f32 %v742, %v745
    %vm747 = vweird.f32 %v726
    %vm748 = vweird.f32 %v742
    %vm749 = vmor %vm747, %vm748
    %v750 = vsel %vm749, %v742, %v746
    %v751 = vand.u32 2147483647, %v726
    %vm752 = vcmp.eq.f32.partialorder %v751, 8.507059e+37
    %v753 = vand.u32 %v726, 2147483648
    %v754 = vor.u32 1.1754944e-38, %v753
    %v755 = vsel %vm752, %v754, %v750
    %v756 = vmul.f32 %v720, %v755
    %v757 = vmul.f32 %v400, %v530
    %v758 = vmul.f32 %v401, %v531
    %v759 = vsel %vm211, %v757, 0.0
    %760 = vadd.xlane.f32.xlu0 %v759
    %v761 = vpop.xlane.xlu0 %760
    %v762 = vsel %vm211, %v758, 0.0
    %763 = vadd.xlane.f32.xlu0 %v762
    %v764 = vpop.xlane.xlu0 %763
    %v765 = vmul.f32 %v400, %v685
    %v766 = vmul.f32 %v401, %v686
    %v767 = vsel %vm211, %v765, 0.0
    %768 = vadd.xlane.f32.xlu0 %v767
    %v769 = vpop.xlane.xlu0 %768
    %v770 = vsel %vm211, %v766, 0.0
    %771 = vadd.xlane.f32.xlu0 %v770
    %v772 = vpop.xlane.xlu0 %771
    %v773 = vsel %vm703, %v761, %v769
    %v774 = vsel %vm703, %v764, %v772
    %v775 = vmul.f32 %v773, 0.25
    %v776 = vmul.f32 %v774, 0.25
    %v777 = vsel %vm708, %v775, -inf
    %778 = vmax.xlane.f32.xlu0 %v777
    %v779 = vpop.xlane.xlu0 %778
    %v780 = vsel %vm708, %v776, -inf
    %781 = vmax.xlane.f32.xlu0 %v780
    %v782 = vpop.xlane.xlu0 %781
    %v783 = vsub.f32 %v775, %v779
    %v784 = vsub.f32 %v776, %v782
    %v785 = vmul.f32 %v783, 1.442695
    %v786 = vpow.pop %v785
    %v787 = vmul.f32 %v784, 1.442695
    %v788 = vpow.pop %v787
    %v789 = vsel %vm708, %v786, 0.0
    %790 = vadd.xlane.f32.xlu0 %v789
    %v791 = vpop.xlane.xlu0 %790
    %v792 = vsel %vm708, %v788, 0.0
    %793 = vadd.xlane.f32.xlu0 %v792
    %v794 = vpop.xlane.xlu0 %793
    %v795 = vrcp.pop %v791
    %v796 = vmul.f32 %v791, %v795
    %v797 = vsub.f32 1.0, %v796
    %v798 = vmul.f32 %v795, %v797
    %v799 = vadd.f32 %v795, %v798
    %vm800 = vweird.f32 %v791
    %vm801 = vweird.f32 %v795
    %vm802 = vmor %vm800, %vm801
    %v803 = vsel %vm802, %v795, %v799
    %v804 = vand.u32 2147483647, %v791
    %vm805 = vcmp.eq.f32.partialorder %v804, 8.507059e+37
    %v806 = vand.u32 %v791, 2147483648
    %v807 = vor.u32 1.1754944e-38, %v806
    %v808 = vsel %vm805, %v807, %v803
    %v809 = vmul.f32 %v786, %v808
    %v810 = vrcp.pop %v794
    %v811 = vmul.f32 %v794, %v810
    %v812 = vsub.f32 1.0, %v811
    %v813 = vmul.f32 %v810, %v812
    %v814 = vadd.f32 %v810, %v813
    %vm815 = vweird.f32 %v794
    %vm816 = vweird.f32 %v810
    %vm817 = vmor %vm815, %vm816
    %v818 = vsel %vm817, %v810, %v814
    %v819 = vand.u32 2147483647, %v794
    %vm820 = vcmp.eq.f32.partialorder %v819, 8.507059e+37
    %v821 = vand.u32 %v794, 2147483648
    %v822 = vor.u32 1.1754944e-38, %v821
    %v823 = vsel %vm820, %v822, %v818
    %v824 = vmul.f32 %v788, %v823
    %827 = vrot.lane.b32.xlu0 %v809, 2
    %v828 = vpop.permute.xlu0 %827
    %829 = vrot.lane.b32.xlu0 %v824, 2
    %v830 = vpop.permute.xlu0 %829
    %v833 = vsel %vm708, %v741, %v828
    %v834 = vsel %vm708, %v756, %v830
    %835 = vst.msk [vmem:[%s8] sm:$0xff] %vm211, %v833
    %836 = vst.msk [vmem:[%s8 + $0x8] sm:$0xff] %vm211, %v834
    // Predicated region
    $region42: #{tpu_custom_call.1} parent=1 // pred_check
      _
    $region43: #{tpu_custom_call.1} parent=1 // pred_check_branch
      %838 = sbr.rel (0) target = $region45
    $region44: #{tpu_custom_call.1} parent=1 // pred_region
      _
    $region45: #{tpu_custom_call.1} parent=1 // pred_fallthru
      _
    // Predicated region
    $region46: #{tpu_custom_call.1} parent=1 // pred_check
      _
    $region47: #{tpu_custom_call.1} parent=1 // pred_check_branch
      %840 = sbr.rel (0) target = $region49
    $region48: #{tpu_custom_call.1} parent=1 // pred_region
      _
    $region49: #{tpu_custom_call.1} parent=1 // pred_fallthru
      _
    %841 = vsyncpa [#allocation3], 1
    %842 = vsyncpa [#allocation5], 1

</llo_original>
